<compile_context>
chip_gen: v6e
topology: v6e:2x2x1
jax: 0.10.0
libtpu: 0.0.40
codegen_flags: <defaults>
</compile_context>

<pallas_src>
import numpy as np
import jax
import jax.numpy as jnp
from jax import lax
from jax.experimental import pallas as pl
from jax.experimental.pallas import tpu as pltpu


def make_kernel_np(k):
    """NumPy port of the PyTorch make_kernel."""
    k = np.asarray(k, dtype=np.float32)
    if k.ndim == 1:
        k = k[None, :] * k[:, None]
    k = k / k.sum()
    return k


def _round_up(x, m):
    return (x + m - 1) // m * m


def build_upsample(kernel_1d=(1, 3, 3, 1), factor=2, block_b=None):
    """Returns fn(x: (N, C, H, W)) -> (N, C, H*factor, W*factor), same dtype."""
    up = int(factor)
    k1 = np.asarray(kernel_1d, dtype=np.float32)
    assert k1.ndim == 1, "separable 1-D blur kernel expected"
    K = k1.shape[0]
    p = K - up
    pad0 = (p + 1) // 2 + up - 1
    pad1 = p // 2
    # upfirdn2d applies F.conv2d with the *flipped* kernel (true convolution).
    # make_kernel(k)*factor**2 = outer(k,k)/sum(k)**2 * factor**2 is separable:
    # w_flip[a, b] = g[a] * g[b] with g = flip(k)/sum(k) * factor.
    g = (k1[::-1] / k1.sum() * up).astype(np.float32)

    # Vertical polyphase taps: output row y = up*qy + ry uses FIR tap ky iff
    # (ry + ky - pad0) % up == 0, reading row qy + dy with dy=(ry+ky-pad0)//up.
    vtaps = []
    for r in range(up):
        vtaps.append([(ky, (r + ky - pad0) // up) for ky in range(K)
                      if (r + ky - pad0) % up == 0])
    all_dy = [d for tr in vtaps for (_, d) in tr] or [0]
    pad_top = max(0, -min(all_dy))     # zero halo rows above
    pad_bot = max(0, max(all_dy))      # zero halo rows below

    def kernel_fn(xz_ref, o_ref, hbuf_ref):
        # xz_ref  : (TB, Hz, Wz)  rows halo-padded, columns zero-upsampled+padded
        # o_ref   : (TB, H, up*Wout); lane block ry*Wout:(ry+1)*Wout is output
        #           row up*qy+ry  (row-major identical to (TB, H*up, Wout)).
        # hbuf_ref: (TB, Hz, Wout) f32 scratch — horizontal FIR at output width.
        _, Hz, Wz = xz_ref.shape
        Wout = Wz - (K - 1)            # = W * up
        H = o_ref.shape[1]

        # Horizontal pass: dense K-tap FIR along lanes (shifted ref reads only).
        hbuf = float(g[0]) * xz_ref[:, :, 0:Wout].astype(jnp.float32)
        for t in range(1, K):
            hbuf = hbuf + float(g[t]) * xz_ref[:, :, t:t + Wout].astype(jnp.float32)
        hbuf_ref[...] = hbuf

        # Vertical pass: polyphase per row phase; each phase is one lane-dense
        # contiguous store into the output slab (no shuffles, no transposes).
        for ry in range(up):
            ky0, dy0 = vtaps[ry][0]
            acc = float(g[ky0]) * hbuf_ref[:, pad_top + dy0: pad_top + dy0 + H, :]
            for (ky, dy) in vtaps[ry][1:]:
                acc = acc + float(g[ky]) * hbuf_ref[:, pad_top + dy: pad_top + dy + H, :]
            o_ref[:, :, ry * Wout:(ry + 1) * Wout] = acc.astype(o_ref.dtype)

    @jax.jit
    def upsample(x):
        N, C, H, W = x.shape
        B = N * C
        dt = x.dtype
        isz = jnp.dtype(dt).itemsize
        Wout = W * up
        Hz = H + pad_top + pad_bot
        Wz = Wout + (K - 1)

        # Batch tile: double-buffered DMA tiles + f32 scratch/temps <= ~16 MiB
        # (VMEM-tiling-padded estimate), so it fits the scoped limit on all of
        # v5e/v6e and v7x's smaller 64 MiB physical VMEM.
        in_b = _round_up(Hz, 8) * _round_up(Wz, 128) * isz
        out_b = _round_up(H, 8) * _round_up(up * Wout, 128) * isz
        hbuf_b = _round_up(Hz, 8) * _round_up(Wout, 128) * 4
        acc_b = _round_up(H, 8) * _round_up(Wout, 128) * 4
        per_b = 2 * (in_b + out_b) + hbuf_b + 2 * acc_b
        if block_b is None:
            TB = int(min(B, max(1, (16 * 1024 * 1024) // per_b), 256))
            if TB >= 8:
                TB -= TB % 8
        else:
            TB = int(min(block_b, B))
        grid_b = pl.cdiv(B, TB)
        B_pad = grid_b * TB

        # One XLA pad does everything the old in-kernel scratch zero/copy did:
        # pad B to a tile multiple, add the row halo, and zero-upsample + pad
        # the columns (lo=pad0, interior=up-1, hi=pad1+up-1 reproduces the
        # padded zero-upsampled signal of upfirdn2d exactly).
        xb = x.reshape(B, H, W)
        xz = lax.pad(xb, jnp.array(0, dt),
                     ((0, B_pad - B, 0),
                      (pad_top, pad_bot, 0),
                      (pad0, pad1 + up - 1, up - 1)))

        out = pl.pallas_call(
            kernel_fn,
            out_shape=jax.ShapeDtypeStruct((B_pad, H, up * Wout), dt),
            grid=(grid_b,),
            in_specs=[pl.BlockSpec((TB, Hz, Wz), lambda i: (i, 0, 0))],
            out_specs=pl.BlockSpec((TB, H, up * Wout), lambda i: (i, 0, 0)),
            scratch_shapes=[pltpu.VMEM((TB, Hz, Wout), jnp.float32)],
            compiler_params=pltpu.CompilerParams(
                dimension_semantics=("parallel",),
                vmem_limit_bytes=32 * 1024 * 1024),
        )(xz)

        # (B, H, up*Wout) is row-major identical to (B, H*up, Wout): free reshape.
        return out[:B].reshape(N, C, H * up, W * up)

    return upsample


def upsample_ref(x, kernel_1d=(1, 3, 3, 1), factor=2):
    """Pure-JAX reference (matches upfirdn2d semantics exactly)."""
    up = int(factor)
    kern = jnp.asarray(make_kernel_np(kernel_1d) * up ** 2)
    K = kern.shape[0]
    p = K - up
    pad0 = (p + 1) // 2 + up - 1
    pad1 = p // 2
    N, C, H, W = x.shape
    xb = x.reshape(N * C, 1, H, W).astype(jnp.float32)
    w = jnp.flip(kern, (0, 1))[None, None]           # conv2d uses flipped kernel
    out = lax.conv_general_dilated(
        xb, w, window_strides=(1, 1),
        padding=((pad0, pad1 + up - 1), (pad0, pad1 + up - 1)),
        lhs_dilation=(up, up),
        dimension_numbers=("NCHW", "OIHW", "NCHW"))
    return out.reshape(N, C, H * up, W * up).astype(x.dtype)


if __name__ == "__main__":
    key = jax.random.PRNGKey(0)
    x = jax.random.normal(key, (2, 4, 16, 16), dtype=jnp.float32)

    upsample = build_upsample(kernel_1d=(1, 3, 3, 1), factor=2)
    y = jax.block_until_ready(upsample(x))
    assert y.shape == (2, 4, 32, 32), y.shape

    y_ref = upsample_ref(x)
    err = float(jnp.max(jnp.abs(y - y_ref)))
    assert jnp.allclose(y, y_ref, atol=1e-4, rtol=1e-4), err

    # Exercise the multi-step grid + batch-padding path (B=8, TB=3 -> grid=3).
    upsample_tiled = build_upsample(kernel_1d=(1, 3, 3, 1), factor=2, block_b=3)
    y2 = jax.block_until_ready(upsample_tiled(x))
    assert jnp.allclose(y2, y_ref, atol=1e-4, rtol=1e-4), \
        float(jnp.max(jnp.abs(y2 - y_ref)))

    print("KERNEL_OK")
</pallas_src>

<mosaic_0001>
module attributes {stable_mosaic.version = 11 : i64} {
  func.func @kernel_fn(%arg0: i32, %arg1: memref<8x18x35xf32, #tpu.memory_space<vmem>>, %arg2: memref<8x16x64xf32, #tpu.memory_space<vmem>>, %arg3: memref<8x18x32xf32, #tpu.memory_space<vmem>>) attributes {dimension_semantics = [#tpu.dimension_semantics<parallel>], iteration_bounds = array<i64: 1>, scalar_prefetch = 0 : i64, scratch_operands = 1 : i64, tpu.core_type = #tpu.core_type<tc>, window_params = [{transform_indices = @transform_0, window_bounds = array<i64: 8, 18, 35>}, {transform_indices = @transform_1, window_bounds = array<i64: 8, 16, 64>}]} {
    %c0 = arith.constant 0 : index
    %c0_0 = arith.constant 0 : index
    %c0_1 = arith.constant 0 : index
    %0 = vector.load %arg1[%c0, %c0_0, %c0_1] : memref<8x18x35xf32, #tpu.memory_space<vmem>>, vector<8x18x32xf32>
    %cst = arith.constant 2.500000e-01 : f32
    %1 = vector.broadcast %cst : f32 to vector<8x18x32xf32>
    %2 = arith.mulf %1, %0 : vector<8x18x32xf32>
    %c0_2 = arith.constant 0 : index
    %c0_3 = arith.constant 0 : index
    %c1 = arith.constant 1 : index
    %3 = vector.load %arg1[%c0_2, %c0_3, %c1] : memref<8x18x35xf32, #tpu.memory_space<vmem>>, vector<8x18x32xf32>
    %cst_4 = arith.constant 7.500000e-01 : f32
    %4 = vector.broadcast %cst_4 : f32 to vector<8x18x32xf32>
    %5 = arith.mulf %4, %3 : vector<8x18x32xf32>
    %6 = arith.addf %2, %5 : vector<8x18x32xf32>
    %c0_5 = arith.constant 0 : index
    %c0_6 = arith.constant 0 : index
    %c2 = arith.constant 2 : index
    %7 = vector.load %arg1[%c0_5, %c0_6, %c2] : memref<8x18x35xf32, #tpu.memory_space<vmem>>, vector<8x18x32xf32>
    %cst_7 = arith.constant 7.500000e-01 : f32
    %8 = vector.broadcast %cst_7 : f32 to vector<8x18x32xf32>
    %9 = arith.mulf %8, %7 : vector<8x18x32xf32>
    %10 = arith.addf %6, %9 : vector<8x18x32xf32>
    %c0_8 = arith.constant 0 : index
    %c0_9 = arith.constant 0 : index
    %c3 = arith.constant 3 : index
    %11 = vector.load %arg1[%c0_8, %c0_9, %c3] : memref<8x18x35xf32, #tpu.memory_space<vmem>>, vector<8x18x32xf32>
    %cst_10 = arith.constant 2.500000e-01 : f32
    %12 = vector.broadcast %cst_10 : f32 to vector<8x18x32xf32>
    %13 = arith.mulf %12, %11 : vector<8x18x32xf32>
    %14 = arith.addf %10, %13 : vector<8x18x32xf32>
    %c0_11 = arith.constant 0 : index
    %c0_12 = arith.constant 0 : index
    %c0_13 = arith.constant 0 : index
    %15 = vector.load %arg3[%c0_11, %c0_12, %c0_13] : memref<8x18x32xf32, #tpu.memory_space<vmem>>, vector<8x18x32xf32>
    tpu.vector_store %arg3[%c0_11, %c0_12, %c0_13], %14 {strides = array<i32>} : memref<8x18x32xf32, #tpu.memory_space<vmem>>, vector<8x18x32xf32>,
    %c0_14 = arith.constant 0 : index
    %c0_15 = arith.constant 0 : index
    %c0_16 = arith.constant 0 : index
    %16 = vector.load %arg3[%c0_14, %c0_15, %c0_16] : memref<8x18x32xf32, #tpu.memory_space<vmem>>, vector<8x16x32xf32>
    %cst_17 = arith.constant 2.500000e-01 : f32
    %17 = vector.broadcast %cst_17 : f32 to vector<8x16x32xf32>
    %18 = arith.mulf %17, %16 : vector<8x16x32xf32>
    %c0_18 = arith.constant 0 : index
    %c1_19 = arith.constant 1 : index
    %c0_20 = arith.constant 0 : index
    %19 = vector.load %arg3[%c0_18, %c1_19, %c0_20] : memref<8x18x32xf32, #tpu.memory_space<vmem>>, vector<8x16x32xf32>
    %cst_21 = arith.constant 7.500000e-01 : f32
    %20 = vector.broadcast %cst_21 : f32 to vector<8x16x32xf32>
    %21 = arith.mulf %20, %19 : vector<8x16x32xf32>
    %22 = arith.addf %18, %21 : vector<8x16x32xf32>
    %c0_22 = arith.constant 0 : index
    %c0_23 = arith.constant 0 : index
    %c0_24 = arith.constant 0 : index
    %23 = vector.load %arg2[%c0_22, %c0_23, %c0_24] : memref<8x16x64xf32, #tpu.memory_space<vmem>>, vector<8x16x32xf32>
    tpu.vector_store %arg2[%c0_22, %c0_23, %c0_24], %22 {strides = array<i32>} : memref<8x16x64xf32, #tpu.memory_space<vmem>>, vector<8x16x32xf32>,
    %c0_25 = arith.constant 0 : index
    %c1_26 = arith.constant 1 : index
    %c0_27 = arith.constant 0 : index
    %24 = vector.load %arg3[%c0_25, %c1_26, %c0_27] : memref<8x18x32xf32, #tpu.memory_space<vmem>>, vector<8x16x32xf32>
    %cst_28 = arith.constant 7.500000e-01 : f32
    %25 = vector.broadcast %cst_28 : f32 to vector<8x16x32xf32>
    %26 = arith.mulf %25, %24 : vector<8x16x32xf32>
    %c0_29 = arith.constant 0 : index
    %c2_30 = arith.constant 2 : index
    %c0_31 = arith.constant 0 : index
    %27 = vector.load %arg3[%c0_29, %c2_30, %c0_31] : memref<8x18x32xf32, #tpu.memory_space<vmem>>, vector<8x16x32xf32>
    %cst_32 = arith.constant 2.500000e-01 : f32
    %28 = vector.broadcast %cst_32 : f32 to vector<8x16x32xf32>
    %29 = arith.mulf %28, %27 : vector<8x16x32xf32>
    %30 = arith.addf %26, %29 : vector<8x16x32xf32>
    %c0_33 = arith.constant 0 : index
    %c0_34 = arith.constant 0 : index
    %c32 = arith.constant 32 : index
    %31 = vector.load %arg2[%c0_33, %c0_34, %c32] : memref<8x16x64xf32, #tpu.memory_space<vmem>>, vector<8x16x32xf32>
    tpu.vector_store %arg2[%c0_33, %c0_34, %c32], %30 {strides = array<i32>} : memref<8x16x64xf32, #tpu.memory_space<vmem>>, vector<8x16x32xf32>,
    return
  }
  func.func @transform_0(%arg0: i32) -> (i32, i32, i32) {
    %c0_i32 = arith.constant 0 : i32
    %c0_i32_0 = arith.constant 0 : i32
    %c0_i32_1 = arith.constant 0 : i32
    return %arg0, %c0_i32, %c0_i32_0 : i32, i32, i32
  }
  func.func @transform_1(%arg0: i32) -> (i32, i32, i32) {
    %c0_i32 = arith.constant 0 : i32
    %c0_i32_0 = arith.constant 0 : i32
    %c0_i32_1 = arith.constant 0 : i32
    return %arg0, %c0_i32, %c0_i32_0 : i32, i32, i32
  }
}

</mosaic_0001>

<llo_original>
// kernel: upsample.1
$region0: #{upsample.1}
  #allocation0 [shape = 'u32[]', space=smem, size = 0x4, offset = 0x4, fixed_abs, tag = 'smem constant byte address 0x4 - core index']
  #allocation1 [shape = 'u32[144,128]{1,0:T(1,128)}', space=vmem, size = 0x12000, scoped, tag = 'internal scratch']
  #allocation2 [shape = 'f32[8,18,32]{2,1,0:T(8,128)}', space=vmem, size = 0x18000, scoped, tag = 'scratch operand']
  %s0 = inlined_call_operand.vmem [shape: f32[8,18,35], index: 0, kind: input, shape index: {}]
  %s1 = inlined_call_operand.vmem [shape: f32[8,16,64], index: 1, kind: output, shape index: {}]
  %s2 = sld [smem:[#allocation0]]
  $region14: #{upsample.1} parent=0
    _
  %s4 = ssub.s32 1, %s2
  %s5 = scalar_select 0, %s4, %s2
  // Predicated region
  $region2: #{upsample.1} parent=0 // pred_check
    _
  $region3: #{upsample.1} parent=0 // pred_check_branch
    %7 = sbr.rel (0) target = $region5
  $region4: #{upsample.1} parent=0 // pred_region
    _
  $region5: #{upsample.1} parent=0 // pred_fallthru
    _
  %v8 = vld [vmem:[%s0] sm:$0xff]
  %v9 = vld [vmem:[%s0 + $0x8] sm:$0xff]
  %v10 = vld [vmem:[%s0 + $0x10] sm:$0x3]
  %v11 = vld [vmem:[%s0 + $0x18] sm:$0xff]
  %v12 = vld [vmem:[%s0 + $0x20] sm:$0xff]
  %v13 = vld [vmem:[%s0 + $0x28] sm:$0x3]
  %v14 = vld [vmem:[%s0 + $0x30] sm:$0xff]
  %v15 = vld [vmem:[%s0 + $0x38] sm:$0xff]
  %v16 = vld [vmem:[%s0 + $0x40] sm:$0x3]
  %v17 = vld [vmem:[%s0 + $0x48] sm:$0xff]
  %v18 = vld [vmem:[%s0 + $0x50] sm:$0xff]
  %v19 = vld [vmem:[%s0 + $0x58] sm:$0x3]
  %v20 = vld [vmem:[%s0 + $0x60] sm:$0xff]
  %v21 = vld [vmem:[%s0 + $0x68] sm:$0xff]
  %v22 = vld [vmem:[%s0 + $0x70] sm:$0x3]
  %v23 = vld [vmem:[%s0 + $0x78] sm:$0xff]
  %v24 = vld [vmem:[%s0 + $0x80] sm:$0xff]
  %v25 = vld [vmem:[%s0 + $0x88] sm:$0x3]
  %v26 = vld [vmem:[%s0 + $0x90] sm:$0xff]
  %v27 = vld [vmem:[%s0 + $0x98] sm:$0xff]
  %v28 = vld [vmem:[%s0 + $0xa0] sm:$0x3]
  %v29 = vld [vmem:[%s0 + $0xa8] sm:$0xff]
  %v30 = vld [vmem:[%s0 + $0xb0] sm:$0xff]
  %v31 = vld [vmem:[%s0 + $0xb8] sm:$0x3]
  %v32 = vmul.f32 %v8, 0.25
  %v33 = vmul.f32 %v9, 0.25
  %v34 = vmul.f32 %v10, 0.25
  %v35 = vmul.f32 %v11, 0.25
  %v36 = vmul.f32 %v12, 0.25
  %v37 = vmul.f32 %v13, 0.25
  %v38 = vmul.f32 %v14, 0.25
  %v39 = vmul.f32 %v15, 0.25
  %v40 = vmul.f32 %v16, 0.25
  %v41 = vmul.f32 %v17, 0.25
  %v42 = vmul.f32 %v18, 0.25
  %v43 = vmul.f32 %v19, 0.25
  %v44 = vmul.f32 %v20, 0.25
  %v45 = vmul.f32 %v21, 0.25
  %v46 = vmul.f32 %v22, 0.25
  %v47 = vmul.f32 %v23, 0.25
  %v48 = vmul.f32 %v24, 0.25
  %v49 = vmul.f32 %v25, 0.25
  %v50 = vmul.f32 %v26, 0.25
  %v51 = vmul.f32 %v27, 0.25
  %v52 = vmul.f32 %v28, 0.25
  %v53 = vmul.f32 %v29, 0.25
  %v54 = vmul.f32 %v30, 0.25
  %v55 = vmul.f32 %v31, 0.25
  %v56 = vmul.f32 %v8, 0.75
  %v57 = vmul.f32 %v9, 0.75
  %v58 = vmul.f32 %v10, 0.75
  %v59 = vmul.f32 %v11, 0.75
  %v60 = vmul.f32 %v12, 0.75
  %v61 = vmul.f32 %v13, 0.75
  %v62 = vmul.f32 %v14, 0.75
  %v63 = vmul.f32 %v15, 0.75
  %v64 = vmul.f32 %v16, 0.75
  %v65 = vmul.f32 %v17, 0.75
  %v66 = vmul.f32 %v18, 0.75
  %v67 = vmul.f32 %v19, 0.75
  %v68 = vmul.f32 %v20, 0.75
  %v69 = vmul.f32 %v21, 0.75
  %v70 = vmul.f32 %v22, 0.75
  %v71 = vmul.f32 %v23, 0.75
  %v72 = vmul.f32 %v24, 0.75
  %v73 = vmul.f32 %v25, 0.75
  %v74 = vmul.f32 %v26, 0.75
  %v75 = vmul.f32 %v27, 0.75
  %v76 = vmul.f32 %v28, 0.75
  %v77 = vmul.f32 %v29, 0.75
  %v78 = vmul.f32 %v30, 0.75
  %v79 = vmul.f32 %v31, 0.75
  %104 = vrot.lane.b32.xlu0 %v56, 127
  %v105 = vpop.permute.xlu0 %104
  %106 = vrot.lane.b32.xlu0 %v57, 127
  %v107 = vpop.permute.xlu0 %106
  %108 = vrot.lane.b32.xlu0 %v58, 127
  %v109 = vpop.permute.xlu0 %108
  %110 = vrot.lane.b32.xlu0 %v59, 127
  %v111 = vpop.permute.xlu0 %110
  %112 = vrot.lane.b32.xlu0 %v60, 127
  %v113 = vpop.permute.xlu0 %112
  %114 = vrot.lane.b32.xlu0 %v61, 127
  %v115 = vpop.permute.xlu0 %114
  %116 = vrot.lane.b32.xlu0 %v62, 127
  %v117 = vpop.permute.xlu0 %116
  %118 = vrot.lane.b32.xlu0 %v63, 127
  %v119 = vpop.permute.xlu0 %118
  %120 = vrot.lane.b32.xlu0 %v64, 127
  %v121 = vpop.permute.xlu0 %120
  %122 = vrot.lane.b32.xlu0 %v65, 127
  %v123 = vpop.permute.xlu0 %122
  %124 = vrot.lane.b32.xlu0 %v66, 127
  %v125 = vpop.permute.xlu0 %124
  %126 = vrot.lane.b32.xlu0 %v67, 127
  %v127 = vpop.permute.xlu0 %126
  %128 = vrot.lane.b32.xlu0 %v68, 127
  %v129 = vpop.permute.xlu0 %128
  %130 = vrot.lane.b32.xlu0 %v69, 127
  %v131 = vpop.permute.xlu0 %130
  %132 = vrot.lane.b32.xlu0 %v70, 127
  %v133 = vpop.permute.xlu0 %132
  %134 = vrot.lane.b32.xlu0 %v71, 127
  %v135 = vpop.permute.xlu0 %134
  %136 = vrot.lane.b32.xlu0 %v72, 127
  %v137 = vpop.permute.xlu0 %136
  %138 = vrot.lane.b32.xlu0 %v73, 127
  %v139 = vpop.permute.xlu0 %138
  %140 = vrot.lane.b32.xlu0 %v74, 127
  %v141 = vpop.permute.xlu0 %140
  %142 = vrot.lane.b32.xlu0 %v75, 127
  %v143 = vpop.permute.xlu0 %142
  %144 = vrot.lane.b32.xlu0 %v76, 127
  %v145 = vpop.permute.xlu0 %144
  %146 = vrot.lane.b32.xlu0 %v77, 127
  %v147 = vpop.permute.xlu0 %146
  %148 = vrot.lane.b32.xlu0 %v78, 127
  %v149 = vpop.permute.xlu0 %148
  %150 = vrot.lane.b32.xlu0 %v79, 127
  %v151 = vpop.permute.xlu0 %150
  %v176 = vadd.f32 %v32, %v105
  %v177 = vadd.f32 %v33, %v107
  %v178 = vadd.f32 %v34, %v109
  %v179 = vadd.f32 %v35, %v111
  %v180 = vadd.f32 %v36, %v113
  %v181 = vadd.f32 %v37, %v115
  %v182 = vadd.f32 %v38, %v117
  %v183 = vadd.f32 %v39, %v119
  %v184 = vadd.f32 %v40, %v121
  %v185 = vadd.f32 %v41, %v123
  %v186 = vadd.f32 %v42, %v125
  %v187 = vadd.f32 %v43, %v127
  %v188 = vadd.f32 %v44, %v129
  %v189 = vadd.f32 %v45, %v131
  %v190 = vadd.f32 %v46, %v133
  %v191 = vadd.f32 %v47, %v135
  %v192 = vadd.f32 %v48, %v137
  %v193 = vadd.f32 %v49, %v139
  %v194 = vadd.f32 %v50, %v141
  %v195 = vadd.f32 %v51, %v143
  %v196 = vadd.f32 %v52, %v145
  %v197 = vadd.f32 %v53, %v147
  %v198 = vadd.f32 %v54, %v149
  %v199 = vadd.f32 %v55, %v151
  %200 = vrot.lane.b32.xlu0 %v56, 126
  %v201 = vpop.permute.xlu0 %200
  %202 = vrot.lane.b32.xlu0 %v57, 126
  %v203 = vpop.permute.xlu0 %202
  %204 = vrot.lane.b32.xlu0 %v58, 126
  %v205 = vpop.permute.xlu0 %204
  %206 = vrot.lane.b32.xlu0 %v59, 126
  %v207 = vpop.permute.xlu0 %206
  %208 = vrot.lane.b32.xlu0 %v60, 126
  %v209 = vpop.permute.xlu0 %208
  %210 = vrot.lane.b32.xlu0 %v61, 126
  %v211 = vpop.permute.xlu0 %210
  %212 = vrot.lane.b32.xlu0 %v62, 126
  %v213 = vpop.permute.xlu0 %212
  %214 = vrot.lane.b32.xlu0 %v63, 126
  %v215 = vpop.permute.xlu0 %214
  %216 = vrot.lane.b32.xlu0 %v64, 126
  %v217 = vpop.permute.xlu0 %216
  %218 = vrot.lane.b32.xlu0 %v65, 126
  %v219 = vpop.permute.xlu0 %218
  %220 = vrot.lane.b32.xlu0 %v66, 126
  %v221 = vpop.permute.xlu0 %220
  %222 = vrot.lane.b32.xlu0 %v67, 126
  %v223 = vpop.permute.xlu0 %222
  %224 = vrot.lane.b32.xlu0 %v68, 126
  %v225 = vpop.permute.xlu0 %224
  %226 = vrot.lane.b32.xlu0 %v69, 126
  %v227 = vpop.permute.xlu0 %226
  %228 = vrot.lane.b32.xlu0 %v70, 126
  %v229 = vpop.permute.xlu0 %228
  %230 = vrot.lane.b32.xlu0 %v71, 126
  %v231 = vpop.permute.xlu0 %230
  %232 = vrot.lane.b32.xlu0 %v72, 126
  %v233 = vpop.permute.xlu0 %232
  %234 = vrot.lane.b32.xlu0 %v73, 126
  %v235 = vpop.permute.xlu0 %234
  %236 = vrot.lane.b32.xlu0 %v74, 126
  %v237 = vpop.permute.xlu0 %236
  %238 = vrot.lane.b32.xlu0 %v75, 126
  %v239 = vpop.permute.xlu0 %238
  %240 = vrot.lane.b32.xlu0 %v76, 126
  %v241 = vpop.permute.xlu0 %240
  %242 = vrot.lane.b32.xlu0 %v77, 126
  %v243 = vpop.permute.xlu0 %242
  %244 = vrot.lane.b32.xlu0 %v78, 126
  %v245 = vpop.permute.xlu0 %244
  %246 = vrot.lane.b32.xlu0 %v79, 126
  %v247 = vpop.permute.xlu0 %246
  %v272 = vadd.f32 %v176, %v201
  %v273 = vadd.f32 %v177, %v203
  %v274 = vadd.f32 %v178, %v205
  %v275 = vadd.f32 %v179, %v207
  %v276 = vadd.f32 %v180, %v209
  %v277 = vadd.f32 %v181, %v211
  %v278 = vadd.f32 %v182, %v213
  %v279 = vadd.f32 %v183, %v215
  %v280 = vadd.f32 %v184, %v217
  %v281 = vadd.f32 %v185, %v219
  %v282 = vadd.f32 %v186, %v221
  %v283 = vadd.f32 %v187, %v223
  %v284 = vadd.f32 %v188, %v225
  %v285 = vadd.f32 %v189, %v227
  %v286 = vadd.f32 %v190, %v229
  %v287 = vadd.f32 %v191, %v231
  %v288 = vadd.f32 %v192, %v233
  %v289 = vadd.f32 %v193, %v235
  %v290 = vadd.f32 %v194, %v237
  %v291 = vadd.f32 %v195, %v239
  %v292 = vadd.f32 %v196, %v241
  %v293 = vadd.f32 %v197, %v243
  %v294 = vadd.f32 %v198, %v245
  %v295 = vadd.f32 %v199, %v247
  %320 = vrot.lane.b32.xlu0 %v32, 125
  %v321 = vpop.permute.xlu0 %320
  %322 = vrot.lane.b32.xlu0 %v33, 125
  %v323 = vpop.permute.xlu0 %322
  %324 = vrot.lane.b32.xlu0 %v34, 125
  %v325 = vpop.permute.xlu0 %324
  %326 = vrot.lane.b32.xlu0 %v35, 125
  %v327 = vpop.permute.xlu0 %326
  %328 = vrot.lane.b32.xlu0 %v36, 125
  %v329 = vpop.permute.xlu0 %328
  %330 = vrot.lane.b32.xlu0 %v37, 125
  %v331 = vpop.permute.xlu0 %330
  %332 = vrot.lane.b32.xlu0 %v38, 125
  %v333 = vpop.permute.xlu0 %332
  %334 = vrot.lane.b32.xlu0 %v39, 125
  %v335 = vpop.permute.xlu0 %334
  %336 = vrot.lane.b32.xlu0 %v40, 125
  %v337 = vpop.permute.xlu0 %336
  %338 = vrot.lane.b32.xlu0 %v41, 125
  %v339 = vpop.permute.xlu0 %338
  %340 = vrot.lane.b32.xlu0 %v42, 125
  %v341 = vpop.permute.xlu0 %340
  %342 = vrot.lane.b32.xlu0 %v43, 125
  %v343 = vpop.permute.xlu0 %342
  %344 = vrot.lane.b32.xlu0 %v44, 125
  %v345 = vpop.permute.xlu0 %344
  %346 = vrot.lane.b32.xlu0 %v45, 125
  %v347 = vpop.permute.xlu0 %346
  %348 = vrot.lane.b32.xlu0 %v46, 125
  %v349 = vpop.permute.xlu0 %348
  %350 = vrot.lane.b32.xlu0 %v47, 125
  %v351 = vpop.permute.xlu0 %350
  %352 = vrot.lane.b32.xlu0 %v48, 125
  %v353 = vpop.permute.xlu0 %352
  %354 = vrot.lane.b32.xlu0 %v49, 125
  %v355 = vpop.permute.xlu0 %354
  %356 = vrot.lane.b32.xlu0 %v50, 125
  %v357 = vpop.permute.xlu0 %356
  %358 = vrot.lane.b32.xlu0 %v51, 125
  %v359 = vpop.permute.xlu0 %358
  %360 = vrot.lane.b32.xlu0 %v52, 125
  %v361 = vpop.permute.xlu0 %360
  %362 = vrot.lane.b32.xlu0 %v53, 125
  %v363 = vpop.permute.xlu0 %362
  %364 = vrot.lane.b32.xlu0 %v54, 125
  %v365 = vpop.permute.xlu0 %364
  %366 = vrot.lane.b32.xlu0 %v55, 125
  %v367 = vpop.permute.xlu0 %366
  %v392 = vadd.f32 %v272, %v321
  %v393 = vadd.f32 %v273, %v323
  %v394 = vadd.f32 %v274, %v325
  %v395 = vadd.f32 %v275, %v327
  %v396 = vadd.f32 %v276, %v329
  %v397 = vadd.f32 %v277, %v331
  %v398 = vadd.f32 %v278, %v333
  %v399 = vadd.f32 %v279, %v335
  %v400 = vadd.f32 %v280, %v337
  %v401 = vadd.f32 %v281, %v339
  %v402 = vadd.f32 %v282, %v341
  %v403 = vadd.f32 %v283, %v343
  %v404 = vadd.f32 %v284, %v345
  %v405 = vadd.f32 %v285, %v347
  %v406 = vadd.f32 %v286, %v349
  %v407 = vadd.f32 %v287, %v351
  %v408 = vadd.f32 %v288, %v353
  %v409 = vadd.f32 %v289, %v355
  %v410 = vadd.f32 %v290, %v357
  %v411 = vadd.f32 %v291, %v359
  %v412 = vadd.f32 %v292, %v361
  %v413 = vadd.f32 %v293, %v363
  %v414 = vadd.f32 %v294, %v365
  %v415 = vadd.f32 %v295, %v367
  %vm416 = vcmask 261120
  %417 = vst.msk [vmem:[#allocation2] sm:$0xff] %vm416, %v392
  %418 = vst.msk [vmem:[#allocation2 + $0x8] sm:$0xff] %vm416, %v393
  %vm419 = vcmask 254976
  %420 = vst.msk [vmem:[#allocation2 + $0x10] sm:$0x3] %vm419, %v394
  %421 = vst.msk [vmem:[#allocation2 + $0x18] sm:$0xff] %vm416, %v395
  %422 = vst.msk [vmem:[#allocation2 + $0x20] sm:$0xff] %vm416, %v396
  %423 = vst.msk [vmem:[#allocation2 + $0x28] sm:$0x3] %vm419, %v397
  %424 = vst.msk [vmem:[#allocation2 + $0x30] sm:$0xff] %vm416, %v398
  %425 = vst.msk [vmem:[#allocation2 + $0x38] sm:$0xff] %vm416, %v399
  %426 = vst.msk [vmem:[#allocation2 + $0x40] sm:$0x3] %vm419, %v400
  %427 = vst.msk [vmem:[#allocation2 + $0x48] sm:$0xff] %vm416, %v401
  %428 = vst.msk [vmem:[#allocation2 + $0x50] sm:$0xff] %vm416, %v402
  %429 = vst.msk [vmem:[#allocation2 + $0x58] sm:$0x3] %vm419, %v403
  %430 = vst.msk [vmem:[#allocation2 + $0x60] sm:$0xff] %vm416, %v404
  %431 = vst.msk [vmem:[#allocation2 + $0x68] sm:$0xff] %vm416, %v405
  %432 = vst.msk [vmem:[#allocation2 + $0x70] sm:$0x3] %vm419, %v406
  %433 = vst.msk [vmem:[#allocation2 + $0x78] sm:$0xff] %vm416, %v407
  %434 = vst.msk [vmem:[#allocation2 + $0x80] sm:$0xff] %vm416, %v408
  %435 = vst.msk [vmem:[#allocation2 + $0x88] sm:$0x3] %vm419, %v409
  %436 = vst.msk [vmem:[#allocation2 + $0x90] sm:$0xff] %vm416, %v410
  %437 = vst.msk [vmem:[#allocation2 + $0x98] sm:$0xff] %vm416, %v411
  %438 = vst.msk [vmem:[#allocation2 + $0xa0] sm:$0x3] %vm419, %v412
  %439 = vst.msk [vmem:[#allocation2 + $0xa8] sm:$0xff] %vm416, %v413
  %440 = vst.msk [vmem:[#allocation2 + $0xb0] sm:$0xff] %vm416, %v414
  %441 = vst.msk [vmem:[#allocation2 + $0xb8] sm:$0x3] %vm419, %v415
  %v442 = vld [vmem:[#allocation2] sm:$0xff]
  %v443 = vld [vmem:[#allocation2 + $0x8] sm:$0xff]
  %v444 = vld [vmem:[#allocation2 + $0x18] sm:$0xff]
  %v445 = vld [vmem:[#allocation2 + $0x20] sm:$0xff]
  %v446 = vld [vmem:[#allocation2 + $0x30] sm:$0xff]
  %v447 = vld [vmem:[#allocation2 + $0x38] sm:$0xff]
  %v448 = vld [vmem:[#allocation2 + $0x48] sm:$0xff]
  %v449 = vld [vmem:[#allocation2 + $0x50] sm:$0xff]
  %v450 = vld [vmem:[#allocation2 + $0x60] sm:$0xff]
  %v451 = vld [vmem:[#allocation2 + $0x68] sm:$0xff]
  %v452 = vld [vmem:[#allocation2 + $0x78] sm:$0xff]
  %v453 = vld [vmem:[#allocation2 + $0x80] sm:$0xff]
  %v454 = vld [vmem:[#allocation2 + $0x90] sm:$0xff]
  %v455 = vld [vmem:[#allocation2 + $0x98] sm:$0xff]
  %v456 = vld [vmem:[#allocation2 + $0xa8] sm:$0xff]
  %v457 = vld [vmem:[#allocation2 + $0xb0] sm:$0xff]
  %v458 = vmul.f32 %v442, 0.25
  %v459 = vmul.f32 %v443, 0.25
  %v460 = vmul.f32 %v444, 0.25
  %v461 = vmul.f32 %v445, 0.25
  %v462 = vmul.f32 %v446, 0.25
  %v463 = vmul.f32 %v447, 0.25
  %v464 = vmul.f32 %v448, 0.25
  %v465 = vmul.f32 %v449, 0.25
  %v466 = vmul.f32 %v450, 0.25
  %v467 = vmul.f32 %v451, 0.25
  %v468 = vmul.f32 %v452, 0.25
  %v469 = vmul.f32 %v453, 0.25
  %v470 = vmul.f32 %v454, 0.25
  %v471 = vmul.f32 %v455, 0.25
  %v472 = vmul.f32 %v456, 0.25
  %v473 = vmul.f32 %v457, 0.25
  %v474 = vld [vmem:[#allocation2 + $0x1] sm:$0xff]
  %v475 = vld [vmem:[#allocation2 + $0x9] sm:$0xff]
  %v476 = vld [vmem:[#allocation2 + $0x19] sm:$0xff]
  %v477 = vld [vmem:[#allocation2 + $0x21] sm:$0xff]
  %v478 = vld [vmem:[#allocation2 + $0x31] sm:$0xff]
  %v479 = vld [vmem:[#allocation2 + $0x39] sm:$0xff]
  %v480 = vld [vmem:[#allocation2 + $0x49] sm:$0xff]
  %v481 = vld [vmem:[#allocation2 + $0x51] sm:$0xff]
  %v482 = vld [vmem:[#allocation2 + $0x61] sm:$0xff]
  %v483 = vld [vmem:[#allocation2 + $0x69] sm:$0xff]
  %v484 = vld [vmem:[#allocation2 + $0x79] sm:$0xff]
  %v485 = vld [vmem:[#allocation2 + $0x81] sm:$0xff]
  %v486 = vld [vmem:[#allocation2 + $0x91] sm:$0xff]
  %v487 = vld [vmem:[#allocation2 + $0x99] sm:$0xff]
  %v488 = vld [vmem:[#allocation2 + $0xa9] sm:$0xff]
  %v489 = vld [vmem:[#allocation2 + $0xb1] sm:$0xff]
  %v490 = vmul.f32 %v474, 0.75
  %v491 = vmul.f32 %v475, 0.75
  %v492 = vmul.f32 %v476, 0.75
  %v493 = vmul.f32 %v477, 0.75
  %v494 = vmul.f32 %v478, 0.75
  %v495 = vmul.f32 %v479, 0.75
  %v496 = vmul.f32 %v480, 0.75
  %v497 = vmul.f32 %v481, 0.75
  %v498 = vmul.f32 %v482, 0.75
  %v499 = vmul.f32 %v483, 0.75
  %v500 = vmul.f32 %v484, 0.75
  %v501 = vmul.f32 %v485, 0.75
  %v502 = vmul.f32 %v486, 0.75
  %v503 = vmul.f32 %v487, 0.75
  %v504 = vmul.f32 %v488, 0.75
  %v505 = vmul.f32 %v489, 0.75
  %v506 = vadd.f32 %v458, %v490
  %v507 = vadd.f32 %v459, %v491
  %v508 = vadd.f32 %v460, %v492
  %v509 = vadd.f32 %v461, %v493
  %v510 = vadd.f32 %v462, %v494
  %v511 = vadd.f32 %v463, %v495
  %v512 = vadd.f32 %v464, %v496
  %v513 = vadd.f32 %v465, %v497
  %v514 = vadd.f32 %v466, %v498
  %v515 = vadd.f32 %v467, %v499
  %v516 = vadd.f32 %v468, %v500
  %v517 = vadd.f32 %v469, %v501
  %v518 = vadd.f32 %v470, %v502
  %v519 = vadd.f32 %v471, %v503
  %v520 = vadd.f32 %v472, %v504
  %v521 = vadd.f32 %v473, %v505
  %522 = vst.msk [vmem:[%s1] sm:$0xff] %vm416, %v506
  %523 = vst.msk [vmem:[%s1 + $0x8] sm:$0xff] %vm416, %v507
  %524 = vst.msk [vmem:[%s1 + $0x10] sm:$0xff] %vm416, %v508
  %525 = vst.msk [vmem:[%s1 + $0x18] sm:$0xff] %vm416, %v509
  %526 = vst.msk [vmem:[%s1 + $0x20] sm:$0xff] %vm416, %v510
  %527 = vst.msk [vmem:[%s1 + $0x28] sm:$0xff] %vm416, %v511
  %528 = vst.msk [vmem:[%s1 + $0x30] sm:$0xff] %vm416, %v512
  %529 = vst.msk [vmem:[%s1 + $0x38] sm:$0xff] %vm416, %v513
  %530 = vst.msk [vmem:[%s1 + $0x40] sm:$0xff] %vm416, %v514
  %531 = vst.msk [vmem:[%s1 + $0x48] sm:$0xff] %vm416, %v515
  %532 = vst.msk [vmem:[%s1 + $0x50] sm:$0xff] %vm416, %v516
  %533 = vst.msk [vmem:[%s1 + $0x58] sm:$0xff] %vm416, %v517
  %534 = vst.msk [vmem:[%s1 + $0x60] sm:$0xff] %vm416, %v518
  %535 = vst.msk [vmem:[%s1 + $0x68] sm:$0xff] %vm416, %v519
  %536 = vst.msk [vmem:[%s1 + $0x70] sm:$0xff] %vm416, %v520
  %537 = vst.msk [vmem:[%s1 + $0x78] sm:$0xff] %vm416, %v521
  %v538 = vld [vmem:[#allocation2 + $0x1] sm:$0xff]
  %v539 = vld [vmem:[#allocation2 + $0x9] sm:$0xff]
  %v540 = vld [vmem:[#allocation2 + $0x19] sm:$0xff]
  %v541 = vld [vmem:[#allocation2 + $0x21] sm:$0xff]
  %v542 = vld [vmem:[#allocation2 + $0x31] sm:$0xff]
  %v543 = vld [vmem:[#allocation2 + $0x39] sm:$0xff]
  %v544 = vld [vmem:[#allocation2 + $0x49] sm:$0xff]
  %v545 = vld [vmem:[#allocation2 + $0x51] sm:$0xff]
  %v546 = vld [vmem:[#allocation2 + $0x61] sm:$0xff]
  %v547 = vld [vmem:[#allocation2 + $0x69] sm:$0xff]
  %v548 = vld [vmem:[#allocation2 + $0x79] sm:$0xff]
  %v549 = vld [vmem:[#allocation2 + $0x81] sm:$0xff]
  %v550 = vld [vmem:[#allocation2 + $0x91] sm:$0xff]
  %v551 = vld [vmem:[#allocation2 + $0x99] sm:$0xff]
  %v552 = vld [vmem:[#allocation2 + $0xa9] sm:$0xff]
  %v553 = vld [vmem:[#allocation2 + $0xb1] sm:$0xff]
  %v554 = vmul.f32 %v538, 0.75
  %v555 = vmul.f32 %v539, 0.75
  %v556 = vmul.f32 %v540, 0.75
  %v557 = vmul.f32 %v541, 0.75
  %v558 = vmul.f32 %v542, 0.75
  %v559 = vmul.f32 %v543, 0.75
  %v560 = vmul.f32 %v544, 0.75
  %v561 = vmul.f32 %v545, 0.75
  %v562 = vmul.f32 %v546, 0.75
  %v563 = vmul.f32 %v547, 0.75
  %v564 = vmul.f32 %v548, 0.75
  %v565 = vmul.f32 %v549, 0.75
  %v566 = vmul.f32 %v550, 0.75
  %v567 = vmul.f32 %v551, 0.75
  %v568 = vmul.f32 %v552, 0.75
  %v569 = vmul.f32 %v553, 0.75
  %v570 = vld [vmem:[#allocation2 + $0x2] sm:$0xff]
  %v571 = vld [vmem:[#allocation2 + $0xa] sm:$0xff]
  %v572 = vld [vmem:[#allocation2 + $0x1a] sm:$0xff]
  %v573 = vld [vmem:[#allocation2 + $0x22] sm:$0xff]
  %v574 = vld [vmem:[#allocation2 + $0x32] sm:$0xff]
  %v575 = vld [vmem:[#allocation2 + $0x3a] sm:$0xff]
  %v576 = vld [vmem:[#allocation2 + $0x4a] sm:$0xff]
  %v577 = vld [vmem:[#allocation2 + $0x52] sm:$0xff]
  %v578 = vld [vmem:[#allocation2 + $0x62] sm:$0xff]
  %v579 = vld [vmem:[#allocation2 + $0x6a] sm:$0xff]
  %v580 = vld [vmem:[#allocation2 + $0x7a] sm:$0xff]
  %v581 = vld [vmem:[#allocation2 + $0x82] sm:$0xff]
  %v582 = vld [vmem:[#allocation2 + $0x92] sm:$0xff]
  %v583 = vld [vmem:[#allocation2 + $0x9a] sm:$0xff]
  %v584 = vld [vmem:[#allocation2 + $0xaa] sm:$0xff]
  %v585 = vld [vmem:[#allocation2 + $0xb2] sm:$0xff]
  %v586 = vmul.f32 %v570, 0.25
  %v587 = vmul.f32 %v571, 0.25
  %v588 = vmul.f32 %v572, 0.25
  %v589 = vmul.f32 %v573, 0.25
  %v590 = vmul.f32 %v574, 0.25
  %v591 = vmul.f32 %v575, 0.25
  %v592 = vmul.f32 %v576, 0.25
  %v593 = vmul.f32 %v577, 0.25
  %v594 = vmul.f32 %v578, 0.25
  %v595 = vmul.f32 %v579, 0.25
  %v596 = vmul.f32 %v580, 0.25
  %v597 = vmul.f32 %v581, 0.25
  %v598 = vmul.f32 %v582, 0.25
  %v599 = vmul.f32 %v583, 0.25
  %v600 = vmul.f32 %v584, 0.25
  %v601 = vmul.f32 %v585, 0.25
  %v602 = vadd.f32 %v554, %v586
  %v603 = vadd.f32 %v555, %v587
  %v604 = vadd.f32 %v556, %v588
  %v605 = vadd.f32 %v557, %v589
  %v606 = vadd.f32 %v558, %v590
  %v607 = vadd.f32 %v559, %v591
  %v608 = vadd.f32 %v560, %v592
  %v609 = vadd.f32 %v561, %v593
  %v610 = vadd.f32 %v562, %v594
  %v611 = vadd.f32 %v563, %v595
  %v612 = vadd.f32 %v564, %v596
  %v613 = vadd.f32 %v565, %v597
  %v614 = vadd.f32 %v566, %v598
  %v615 = vadd.f32 %v567, %v599
  %v616 = vadd.f32 %v568, %v600
  %v617 = vadd.f32 %v569, %v601
  %634 = vrot.lane.b32.xlu0 %v602, 32
  %v635 = vpop.permute.xlu0 %634
  %636 = vrot.lane.b32.xlu0 %v603, 32
  %v637 = vpop.permute.xlu0 %636
  %638 = vrot.lane.b32.xlu0 %v604, 32
  %v639 = vpop.permute.xlu0 %638
  %640 = vrot.lane.b32.xlu0 %v605, 32
  %v641 = vpop.permute.xlu0 %640
  %642 = vrot.lane.b32.xlu0 %v606, 32
  %v643 = vpop.permute.xlu0 %642
  %644 = vrot.lane.b32.xlu0 %v607, 32
  %v645 = vpop.permute.xlu0 %644
  %646 = vrot.lane.b32.xlu0 %v608, 32
  %v647 = vpop.permute.xlu0 %646
  %648 = vrot.lane.b32.xlu0 %v609, 32
  %v649 = vpop.permute.xlu0 %648
  %650 = vrot.lane.b32.xlu0 %v610, 32
  %v651 = vpop.permute.xlu0 %650
  %652 = vrot.lane.b32.xlu0 %v611, 32
  %v653 = vpop.permute.xlu0 %652
  %654 = vrot.lane.b32.xlu0 %v612, 32
  %v655 = vpop.permute.xlu0 %654
  %656 = vrot.lane.b32.xlu0 %v613, 32
  %v657 = vpop.permute.xlu0 %656
  %658 = vrot.lane.b32.xlu0 %v614, 32
  %v659 = vpop.permute.xlu0 %658
  %660 = vrot.lane.b32.xlu0 %v615, 32
  %v661 = vpop.permute.xlu0 %660
  %662 = vrot.lane.b32.xlu0 %v616, 32
  %v663 = vpop.permute.xlu0 %662
  %664 = vrot.lane.b32.xlu0 %v617, 32
  %v665 = vpop.permute.xlu0 %664
  %vm682 = vcmask 523520
  %683 = vst.msk [vmem:[%s1] sm:$0xff] %vm682, %v635
  %684 = vst.msk [vmem:[%s1 + $0x8] sm:$0xff] %vm682, %v637
  %685 = vst.msk [vmem:[%s1 + $0x10] sm:$0xff] %vm682, %v639
  %686 = vst.msk [vmem:[%s1 + $0x18] sm:$0xff] %vm682, %v641
  %687 = vst.msk [vmem:[%s1 + $0x20] sm:$0xff] %vm682, %v643
  %688 = vst.msk [vmem:[%s1 + $0x28] sm:$0xff] %vm682, %v645
  %689 = vst.msk [vmem:[%s1 + $0x30] sm:$0xff] %vm682, %v647
  %690 = vst.msk [vmem:[%s1 + $0x38] sm:$0xff] %vm682, %v649
  %691 = vst.msk [vmem:[%s1 + $0x40] sm:$0xff] %vm682, %v651
  %692 = vst.msk [vmem:[%s1 + $0x48] sm:$0xff] %vm682, %v653
  %693 = vst.msk [vmem:[%s1 + $0x50] sm:$0xff] %vm682, %v655
  %694 = vst.msk [vmem:[%s1 + $0x58] sm:$0xff] %vm682, %v657
  %695 = vst.msk [vmem:[%s1 + $0x60] sm:$0xff] %vm682, %v659
  %696 = vst.msk [vmem:[%s1 + $0x68] sm:$0xff] %vm682, %v661
  %697 = vst.msk [vmem:[%s1 + $0x70] sm:$0xff] %vm682, %v663
  %698 = vst.msk [vmem:[%s1 + $0x78] sm:$0xff] %vm682, %v665
  // Predicated region
  $region6: #{upsample.1} parent=0 // pred_check
    _
  $region7: #{upsample.1} parent=0 // pred_check_branch
    %700 = sbr.rel (0) target = $region9
  $region8: #{upsample.1} parent=0 // pred_region
    _
  $region9: #{upsample.1} parent=0 // pred_fallthru
    _
  // Predicated region
  $region10: #{upsample.1} parent=0 // pred_check
    _
  $region11: #{upsample.1} parent=0 // pred_check_branch
    %702 = sbr.rel (0) target = $region13
  $region12: #{upsample.1} parent=0 // pred_region
    _
  $region13: #{upsample.1} parent=0 // pred_fallthru
    _

</llo_original>
